<compile_context>
chip_gen: v7x
topology: tpu7x:2x2x1
jax: 0.10.0
libtpu: 0.0.40
codegen_flags: <defaults>
</compile_context>

<pallas_src>
import jax
import jax.numpy as jnp
from jax.experimental import pallas as pl
from jax.experimental.pallas import tpu as pltpu


def _round_up(x, m):
    return (x + m - 1) // m * m


def conv_relu_kernel(w_ref, b_ref, p_ref, o_ref):
    # w_ref: (Cout, K)      bf16   (resident across the grid)
    # b_ref: (Cout, 1)      f32
    # p_ref: (1, K, TP)     bf16   im2col patches for one batch element / pixel tile
    # o_ref: (1, Cout, TP)         lane-dense output tile (NCHW-flat)
    acc = jnp.dot(w_ref[...], p_ref[0], preferred_element_type=jnp.float32)  # (Cout, TP) f32
    acc = acc + b_ref[...]                 # bias (broadcast over lanes), f32
    o_ref[0] = jnp.maximum(acc, 0.0).astype(o_ref.dtype)   # nl = ReLU, epilogue in f32


def conv_layer_forward(x_nchw, w_oihw, bias=None, *, stride=1, padding=1):
    """Forward pass of conv_layer (conv + bias + ReLU). Input/output are NCHW."""
    N, Cin, H, W = x_nchw.shape
    Cout, _, KH, KW = w_oihw.shape
    Ho = (H + 2 * padding - KH) // stride + 1
    Wo = (W + 2 * padding - KW) // stride + 1
    K = KH * KW * Cin
    P = Ho * Wo
    out_dtype = x_nchw.dtype
    out_itemsize = jnp.dtype(out_dtype).itemsize

    if bias is None:
        bias = jnp.zeros((Cout,), jnp.float32)

    # ---- wrapper glue (stays in NCHW; fused by XLA) ------------------------------------------
    # im2col: patches[n, (kh,kw,cin), (h,w)] = x_pad[n, cin, h*s+kh, w*s+kw]
    x_pad = jnp.pad(x_nchw, ((0, 0), (0, 0), (padding, padding), (padding, padding)))
    cols = []
    for kh in range(KH):
        for kw in range(KW):
            cols.append(x_pad[:, :,
                              kh:kh + stride * (Ho - 1) + 1:stride,
                              kw:kw + stride * (Wo - 1) + 1:stride])
    patches = jnp.stack(cols, axis=1).reshape(N, K, P).astype(jnp.bfloat16)   # (N, K, P)
    # weights: OIHW -> (Cout, KH, KW, Cin) -> (Cout, K), same k-order (kh, kw, cin)
    wmat = jnp.transpose(w_oihw, (0, 2, 3, 1)).reshape(Cout, K).astype(jnp.bfloat16)
    b2 = bias.astype(jnp.float32).reshape(Cout, 1)

    # ---- pixel-tile size from a VMEM budget (keeps v7x's 64 MiB comfortable) -----------------
    VMEM_BUDGET = 8 * 2 ** 20                       # for double-buffered in+out blocks
    bytes_per_col = 2 * K + out_itemsize * Cout     # bf16 patches + output, per output pixel
    tp_cap = max(128, (VMEM_BUDGET // (2 * bytes_per_col)) // 128 * 128)
    TP = int(min(_round_up(P, 128), tp_cap, 8192))  # lane-dense tile (multiple of 128)
    P_pad = _round_up(P, TP)
    if P_pad != P:
        patches = jnp.pad(patches, ((0, 0), (0, 0), (0, P_pad - P)))

    block_bytes = K * TP * 2 + Cout * TP * out_itemsize + Cout * K * 2 + Cout * 4
    vmem_limit = int(min(32 * 2 ** 20, max(8 * 2 ** 20, 4 * block_bytes)))

    out_flat = pl.pallas_call(
        conv_relu_kernel,
        out_shape=jax.ShapeDtypeStruct((N, Cout, P_pad), out_dtype),
        grid_spec=pltpu.PrefetchScalarGridSpec(
            num_scalar_prefetch=0,
            grid=(N, P_pad // TP),
            in_specs=[
                pl.BlockSpec((Cout, K), lambda n, p: (0, 0)),     # weights (resident)
                pl.BlockSpec((Cout, 1), lambda n, p: (0, 0)),     # bias    (resident)
                pl.BlockSpec((1, K, TP), lambda n, p: (n, 0, p)),  # patches tile
            ],
            out_specs=pl.BlockSpec((1, Cout, TP), lambda n, p: (n, 0, p)),
        ),
        compiler_params=pltpu.CompilerParams(
            dimension_semantics=("parallel", "parallel"),
            vmem_limit_bytes=vmem_limit),
    )(wmat, b2, patches)

    # Output is already NCHW-flat: just drop lane padding and reshape (no transpose).
    return out_flat[:, :, :P].reshape(N, Cout, Ho, Wo)


if __name__ == "__main__":
    # Small deterministic config: in_planes=4, out_planes=8, 16x16 spatial, batch=2.
    key = jax.random.PRNGKey(0)
    kx, kw, kb = jax.random.split(key, 3)

    N, Cin, H, W = 2, 4, 16, 16
    Cout, KH, KW = 8, 3, 3

    x = jax.random.normal(kx, (N, Cin, H, W), dtype=jnp.float32)
    # Deterministic "init" for Conv2d weight/bias (synthetic, not a checkpoint).
    w = jax.random.normal(kw, (Cout, Cin, KH, KW), dtype=jnp.float32) * 0.1
    b = jax.random.normal(kb, (Cout,), dtype=jnp.float32) * 0.1

    out = conv_layer_forward(x, w, b, stride=1, padding=1)
    out = jax.block_until_ready(out)

    # Reference: XLA conv + bias + ReLU on the same bf16-quantized operands (kernel uses bf16
    # multiplies with f32 accumulation), full-precision accumulation.
    x_q = x.astype(jnp.bfloat16).astype(jnp.float32)
    w_q = w.astype(jnp.bfloat16).astype(jnp.float32)
    ref = jax.lax.conv_general_dilated(
        x_q, w_q, window_strides=(1, 1), padding=((1, 1), (1, 1)),
        dimension_numbers=("NCHW", "OIHW", "NCHW"),
        precision=jax.lax.Precision.HIGHEST)
    ref = jnp.maximum(ref + b[None, :, None, None], 0.0)

    assert out.shape == (N, Cout, H, W)
    assert jnp.allclose(out, ref, atol=1e-2, rtol=1e-2)

    # TODO(synk): dropout / batch_norm / gated branches (and nl != ReLU) are disabled in the
    # default conv_layer config and are not implemented here.
    print("KERNEL_OK")
</pallas_src>

<mosaic_0001>
module attributes {stable_mosaic.version = 11 : i64} {
  func.func @conv_relu_kernel(%arg0: i32, %arg1: i32, %arg2: memref<8x36xbf16, #tpu.memory_space<vmem>>, %arg3: memref<8x1xf32, #tpu.memory_space<vmem>>, %arg4: memref<1x36x256xbf16, #tpu.memory_space<vmem>>, %arg5: memref<1x8x256xf32, #tpu.memory_space<vmem>>) attributes {dimension_semantics = [#tpu.dimension_semantics<parallel>, #tpu.dimension_semantics<parallel>], iteration_bounds = array<i64: 2, 1>, scalar_prefetch = 0 : i64, scratch_operands = 0 : i64, tpu.core_type = #tpu.core_type<tc>, window_params = [{pipeline_mode = #tpu.pipeline_mode<synchronous>, transform_indices = @transform_0, window_bounds = array<i64: 8, 36>}, {pipeline_mode = #tpu.pipeline_mode<synchronous>, transform_indices = @transform_1, window_bounds = array<i64: 8, 1>}, {transform_indices = @transform_2, window_bounds = array<i64: 1, 36, 256>}, {transform_indices = @transform_3, window_bounds = array<i64: 1, 8, 256>}]} {
    %c0 = arith.constant 0 : index
    %c0_0 = arith.constant 0 : index
    %0 = vector.load %arg2[%c0, %c0_0] : memref<8x36xbf16, #tpu.memory_space<vmem>>, vector<8x36xbf16>
    %c0_1 = arith.constant 0 : index
    %c0_2 = arith.constant 0 : index
    %c0_3 = arith.constant 0 : index
    %1 = vector.load %arg4[%c0_1, %c0_2, %c0_3] : memref<1x36x256xbf16, #tpu.memory_space<vmem>>, vector<1x36x256xbf16>
    %2 = vector.shape_cast %1 : vector<1x36x256xbf16> to vector<36x256xbf16>
    %cst = arith.constant dense<0.000000e+00> : vector<8x256xf32>
    %3 = tpu.matmul %0, %2, %cst {dimension_numbers = #tpu.dot_dimension_numbers<[1], [0], [0], [1], [0, 0, 1, 1], [], []>} : vector<8x36xbf16>, vector<36x256xbf16>, vector<8x256xf32> -> vector<8x256xf32>
    %c0_4 = arith.constant 0 : index
    %c0_5 = arith.constant 0 : index
    %4 = vector.load %arg3[%c0_4, %c0_5] : memref<8x1xf32, #tpu.memory_space<vmem>>, vector<8x1xf32>
    %5 = vector.broadcast %4 : vector<8x1xf32> to vector<8x256xf32>
    %6 = arith.addf %3, %5 : vector<8x256xf32>
    %cst_6 = arith.constant 0.000000e+00 : f32
    %7 = vector.broadcast %cst_6 : f32 to vector<8x256xf32>
    %8 = arith.maximumf %6, %7 : vector<8x256xf32>
    %c0_7 = arith.constant 0 : index
    %c0_8 = arith.constant 0 : index
    %c0_9 = arith.constant 0 : index
    %9 = vector.load %arg5[%c0_7, %c0_8, %c0_9] : memref<1x8x256xf32, #tpu.memory_space<vmem>>, vector<1x8x256xf32>
    %10 = vector.shape_cast %9 : vector<1x8x256xf32> to vector<8x256xf32>
    %11 = vector.shape_cast %8 : vector<8x256xf32> to vector<1x8x256xf32>
    tpu.vector_store %arg5[%c0_7, %c0_8, %c0_9], %11 {strides = array<i32>} : memref<1x8x256xf32, #tpu.memory_space<vmem>>, vector<1x8x256xf32>,
    return
  }
  func.func @transform_0(%arg0: i32, %arg1: i32) -> (i32, i32) {
    %c0_i32 = arith.constant 0 : i32
    %c0_i32_0 = arith.constant 0 : i32
    %c0_i32_1 = arith.constant 0 : i32
    return %c0_i32, %c0_i32_0 : i32, i32
  }
  func.func @transform_1(%arg0: i32, %arg1: i32) -> (i32, i32) {
    %c0_i32 = arith.constant 0 : i32
    %c0_i32_0 = arith.constant 0 : i32
    %c0_i32_1 = arith.constant 0 : i32
    return %c0_i32, %c0_i32_0 : i32, i32
  }
  func.func @transform_2(%arg0: i32, %arg1: i32) -> (i32, i32, i32) {
    %c0_i32 = arith.constant 0 : i32
    %c0_i32_0 = arith.constant 0 : i32
    return %arg0, %c0_i32, %arg1 : i32, i32, i32
  }
  func.func @transform_3(%arg0: i32, %arg1: i32) -> (i32, i32, i32) {
    %c0_i32 = arith.constant 0 : i32
    %c0_i32_0 = arith.constant 0 : i32
    return %arg0, %c0_i32, %arg1 : i32, i32, i32
  }
}

</mosaic_0001>

<llo_original>
// kernel: tpu_custom_call.1
$region0: #{tpu_custom_call.1}
  #allocation0 [shape = 'u32[]', space=smem, size = 0x4, offset = 0x4, fixed_abs, tag = 'smem constant byte address 0x4 - core index']
  #allocation1 [shape = 'u32[144,128]{1,0:T(1,128)}', space=vmem, size = 0x12000, scoped, tag = 'internal scratch']
  %s0 = inlined_call_operand.vmem [shape: bf16[8,36], index: 0, kind: input, shape index: {}]
  %s1 = inlined_call_operand.vmem [shape: f32[8,1], index: 1, kind: input, shape index: {}]
  %s2 = inlined_call_operand.vmem [shape: bf16[2,36,256], index: 2, kind: input, shape index: {}]
  %s3 = inlined_call_operand.hbm [shape: f32[2,8,256], index: 3, kind: output, shape index: {}]
  %s4 = sld [smem:[#allocation0]]
  $region45: #{tpu_custom_call.1} parent=0
    _
  %s6 = ssub.s32 1, %s4
  %s7 = scalar_select 0, %s6, %s4
  $region1: #{tpu_custom_call.1} parent=0
    #allocation2 [shape = 'u8[16384]{0}', space=vmem, size = 0x4000, scoped, tag = 'output window, operand 0']
    #allocation3 [shape = 's32[2]{0}', space=sflag, size = 0x8, scoped, tag = 'scoped memory for tpu_custom_call.1']
    %8 = vsyncpa [#allocation3], 0
    %s9 = scalar_lea.sflag [#allocation3], 1
    %10 = vsyncpa %s9, 0
    loop: start=0, step=1, limit=4
    $region2: #{tpu_custom_call.1} parent=1 // loop_pre_header
      _
    $region3: #{tpu_custom_call.1} parent=1 // loop_header
      %s12 = sphi 0, %s16
      %p13 = scmp.ge.s32.totalorder %s12, 4
      %s19 = sphi 0, %s31
      %s20 = sphi 0, %s27
      %s21 = sphi 0, %s19
      %s22 = sphi 0, %s20
      %s23 = sphi 0, %s21
      %s24 = sphi 0, %s22
      %s32 = sphi 0, %s32
      %s34 = sphi 0, %s32
      %s35 = sphi 0, %s34
      %s49 = sphi 0, %s35
      %s53 = sphi 0, %s53
      %s55 = sphi 0, %s53
      %s56 = sphi 0, %s55
      %s70 = sphi 0, %s56
      %s78 = sphi 0, %s80
      %s81 = sphi 0, %s78
      %s82 = sphi 0, %s81
      %s98 = sphi 0, %s82
      %s106 = sphi 0, %s108
      %s109 = sphi 0, %s106
      %s110 = sphi 0, %s109
      %s126 = sphi 0, %s110
    $region4: #{tpu_custom_call.1} parent=1 // loop_header_branch
      %15 = sbr.rel (%p13) target = $region8
    $region5: #{tpu_custom_call.1} parent=1 // loop_body
      %s17 = ssub.s32 %s12, 1
      %s18 = ssub.s32 %s12, 2
      %s25 = sadd.s32 1, %s20
      %p26 = scmp.ge.s32.totalorder %s25, 1
      %s27 = scalar_select %p26, 0, %s25
      %s28 = sadd.s32 1, %s19
      %s29 = scalar_select %p26, %s28, %s19
      %p30 = scmp.ge.s32.totalorder %s29, 2
      %s31 = scalar_select %p30, 0, %s29
      %s33 = sadd.s32 %s32, 1
      %p36 = scmp.eq.s32.totalorder %s12, 1
      %p37 = scmp.ne.s32.totalorder %s32, %s34
      %p38 = scmp.eq.s32.totalorder %s12, 0
      %p39 = por %p37, %p38
      %p40 = scmp.ne.s32.totalorder %s32, %s34
      %p41 = scmp.eq.s32.totalorder %s17, 1
      %p42 = por %p40, %p41
      %p43 = scmp.ne.s32.totalorder %s34, %s35
      %p44 = scmp.eq.s32.totalorder %s17, 0
      %p45 = por %p43, %p44
      %p46 = scmp.ne.s32.totalorder %s34, %s35
      %p47 = scmp.eq.s32.totalorder %s18, 1
      %p48 = por %p46, %p47
      %p50 = scmp.ne.s32.totalorder %s35, %s49
      %p51 = scmp.eq.s32.totalorder %s18, 0
      %p52 = por %p50, %p51
      %s54 = sadd.s32 %s53, 1
      %p57 = scmp.eq.s32.totalorder %s12, 1
      %p58 = scmp.ne.s32.totalorder %s53, %s55
      %p59 = scmp.eq.s32.totalorder %s12, 0
      %p60 = por %p58, %p59
      %p61 = scmp.ne.s32.totalorder %s53, %s55
      %p62 = scmp.eq.s32.totalorder %s17, 1
      %p63 = por %p61, %p62
      %p64 = scmp.ne.s32.totalorder %s55, %s56
      %p65 = scmp.eq.s32.totalorder %s17, 0
      %p66 = por %p64, %p65
      %p67 = scmp.ne.s32.totalorder %s55, %s56
      %p68 = scmp.eq.s32.totalorder %s18, 1
      %p69 = por %p67, %p68
      %p71 = scmp.ne.s32.totalorder %s56, %s70
      %p72 = scmp.eq.s32.totalorder %s18, 0
      %p73 = por %p71, %p72
      %s74 = ssub.s32 %s19, %s31
      %s75 = ssub.s32 %s20, %s27
      %s76 = sor.u32 %s74, %s75
      %p77 = scmp.eq.s32.totalorder %s76, 0
      %s79 = sadd.s32 %s78, 1
      %s80 = scalar_select %p77, %s78, %s79
      %p83 = pneg %p77
      %p84 = scmp.eq.s32.totalorder %s12, 1
      %p85 = por %p83, %p84
      %p86 = scmp.ne.s32.totalorder %s78, %s81
      %p87 = scmp.eq.s32.totalorder %s12, 0
      %p88 = por %p86, %p87
      %p89 = scmp.ne.s32.totalorder %s78, %s81
      %p90 = scmp.eq.s32.totalorder %s17, 1
      %p91 = por %p89, %p90
      %p92 = scmp.ne.s32.totalorder %s81, %s82
      %p93 = scmp.eq.s32.totalorder %s17, 0
      %p94 = por %p92, %p93
      %p95 = scmp.ne.s32.totalorder %s81, %s82
      %p96 = scmp.eq.s32.totalorder %s18, 1
      %p97 = por %p95, %p96
      %p99 = scmp.ne.s32.totalorder %s82, %s98
      %p100 = scmp.eq.s32.totalorder %s18, 0
      %p101 = por %p99, %p100
      %s102 = ssub.s32 %s19, %s31
      %s103 = ssub.s32 %s20, %s27
      %s104 = sor.u32 %s102, %s103
      %p105 = scmp.eq.s32.totalorder %s104, 0
      %s107 = sadd.s32 %s106, 1
      %s108 = scalar_select %p105, %s106, %s107
      %p111 = pneg %p105
      %p112 = scmp.eq.s32.totalorder %s12, 1
      %p113 = por %p111, %p112
      %p114 = scmp.ne.s32.totalorder %s106, %s109
      %p115 = scmp.eq.s32.totalorder %s12, 0
      %p116 = por %p114, %p115
      %p117 = scmp.ne.s32.totalorder %s106, %s109
      %p118 = scmp.eq.s32.totalorder %s17, 1
      %p119 = por %p117, %p118
      %p120 = scmp.ne.s32.totalorder %s109, %s110
      %p121 = scmp.eq.s32.totalorder %s17, 0
      %p122 = por %p120, %p121
      %p123 = scmp.ne.s32.totalorder %s109, %s110
      %p124 = scmp.eq.s32.totalorder %s18, 1
      %p125 = por %p123, %p124
      %p127 = scmp.ne.s32.totalorder %s110, %s126
      %p128 = scmp.eq.s32.totalorder %s18, 0
      %p129 = por %p127, %p128
      %p130 = scmp.le.s32.totalorder 1, %s12
      %p131 = scmp.lt.s32.totalorder %s12, 3
      %p132 = pnand %p130, %p131
      %p133 = pneg %p132
      // Predicated region
      $region9: #{tpu_custom_call.1} parent=5 // pred_check
        _
      $region10: #{tpu_custom_call.1} parent=5 // pred_check_branch
        %135 = sbr.rel (%p132) target = $region12
      $region11: #{tpu_custom_call.1} parent=5 // pred_region
        %s136 = ssub.s32 %s12, 1
        // Predicated region
        $region13: #{tpu_custom_call.1} parent=11 // pred_check
          %p137 = pneg %p45
        $region14: #{tpu_custom_call.1} parent=11 // pred_check_branch
          %139 = sbr.rel (%p137) target = $region16
        $region15: #{tpu_custom_call.1} parent=11 // pred_region
          _
        $region16: #{tpu_custom_call.1} parent=11 // pred_fallthru
          _
        // Predicated region
        $region17: #{tpu_custom_call.1} parent=11 // pred_check
          %p140 = pneg %p66
        $region18: #{tpu_custom_call.1} parent=11 // pred_check_branch
          %142 = sbr.rel (%p140) target = $region20
        $region19: #{tpu_custom_call.1} parent=11 // pred_region
          _
        $region20: #{tpu_custom_call.1} parent=11 // pred_fallthru
          _
      $region12: #{tpu_custom_call.1} parent=5 // pred_fallthru
        _
      %p143 = scmp.lt.s32.totalorder %s12, 2
      // Predicated region
      $region21: #{tpu_custom_call.1} parent=5 // pred_check
        %p144 = pneg %p143
      $region22: #{tpu_custom_call.1} parent=5 // pred_check_branch
        %146 = sbr.rel (%p144) target = $region24
      $region23: #{tpu_custom_call.1} parent=5 // pred_region
        // Predicated region
        $region25: #{tpu_custom_call.1} parent=23 // pred_check
          %p147 = pneg %p88
        $region26: #{tpu_custom_call.1} parent=23 // pred_check_branch
          %149 = sbr.rel (%p147) target = $region28
        $region27: #{tpu_custom_call.1} parent=23 // pred_region
          %s150 = smul.u32 2, %s20
          %p151 = scmp.lt.s32.totalorder %s19, 1
          %s152 = scalar_select %p151, %s19, 1
          %p153 = scmp.lt.s32.totalorder %s150, 1
          %s154 = scalar_select %p153, %s150, 1
          %s155 = smul.addr %s152, 10
          %s156 = sadd.s32 %s154, %s155
          %s157 = smul.addr %s156, 4
          %s158 = scalar_lea.vmem %s2, %s157
          %s159 = smul.u32 2, %s20
        $region28: #{tpu_custom_call.1} parent=23 // pred_fallthru
          _
      $region24: #{tpu_custom_call.1} parent=5 // pred_fallthru
        _
      %p160 = scmp.le.s32.totalorder 1, %s12
      %p161 = scmp.lt.s32.totalorder %s12, 3
      %p162 = pnand %p160, %p161
      %p163 = pneg %p162
      // Predicated region
      $region29: #{tpu_custom_call.1} parent=5 // pred_check
        _
      $region30: #{tpu_custom_call.1} parent=5 // pred_check_branch
        %165 = sbr.rel (%p162) target = $region32
      $region31: #{tpu_custom_call.1} parent=5 // pred_region
        %s166 = ssub.s32 %s12, 1
        %p167 = pneg %p45
        %p168 = pneg %p42
        %p169 = pneg %p66
        %p170 = pneg %p63
        %s171 = smul.u32 2, %s22
        %p172 = scmp.lt.s32.totalorder %s21, 1
        %s173 = scalar_select %p172, %s21, 1
        %p174 = scmp.lt.s32.totalorder %s171, 1
        %s175 = scalar_select %p174, %s171, 1
        %s176 = smul.addr %s173, 10
        %s177 = sadd.s32 %s175, %s176
        %s178 = smul.addr %s177, 4
        %s179 = scalar_lea.vmem %s2, %s178
        %p180 = pneg %p94
        %p181 = pneg %p91
        %p182 = pneg %p122
        %p183 = pneg %p119
        %s184 = sand.u32 %s109, 1
        %s185 = scalar_lea.sflag [#allocation3], %s184
        %s186 = sand.u32 %s109, 1
        %s187 = smul.addr %s186, 16
        %s188 = scalar_lea.vmem [#allocation2], %s187
        %s189 = smul.u32 2, %s22
        %p190 = scmp.lt.s32.totalorder %s21, 1
        %s191 = scalar_select %p190, %s21, 1
        %p192 = scmp.lt.s32.totalorder %s189, 1
        %s193 = scalar_select %p192, %s189, 1
        %s194 = smul.addr %s191, 10
        %s195 = sadd.s32 %s193, %s194
        %s196 = smul.addr %s195, 4
        %s197 = scalar_lea.vmem %s2, %s196
        %s198 = smul.u32 2, %s22
        %s199 = smul.u32 2, %s22
        %v201 = vld [vmem:[%s0] sm:$0xf]
        %v202 = vld [vmem:[%s197] sm:$0xff]
        %v203 = vld [vmem:[%s197 + $0x8] sm:$0xff]
        %v204 = vld [vmem:[%s197 + $0x10] sm:$0xff]
        %v205 = vld [vmem:[%s197 + $0x18] sm:$0xff]
        %v206 = vld [vmem:[%s197 + $0x20] sm:$0x33]
        %v207 = vld [vmem:[%s1] sm:$0xff]
        %209 = vset.pattern.permute.xlu0 0
        %210 = vperm.xlu0 %209, %v207
        %v211 = vpop.permute.xlu0 %210
        %v218 = vunpack.c.l.b16 %v202
        %v219 = vunpack.c.h.b16 %v202
        %v220 = vunpack.c.l.b16 %v203
        %v221 = vunpack.c.h.b16 %v203
        %v222 = vunpack.c.l.b16 %v204
        %v223 = vunpack.c.h.b16 %v204
        %v224 = vunpack.c.l.b16 %v205
        %v225 = vunpack.c.h.b16 %v205
        %v226 = vunpack.c.l.b16 %v206
        %v227 = vunpack.c.h.b16 %v206
        %v228 = vpack.c.b16 %v220, %v218
        %v229 = vpack.c.b16 %v221, %v219
        %v230 = vpack.c.b16 %v224, %v222
        %v231 = vpack.c.b16 %v225, %v223
        %v232 = vpack.c.b16 %v226, %v226
        %v233 = vpack.c.b16 %v227, %v227
        %vm238 = vcmask 293888
        %v240 = vsel %vm238, %v201, 0
        %vm242 = vcmask 1041408
        %v244 = vsel %vm242, %v232, 0
        %v247 = vsel %vm242, %v233, 0
        %249 = vmatprep.subr.bf16.mxu0 %v229
        %250 = vmatpush1.bf16.msra.mxu0 %v228
        %251 = vmatprep.subr.bf16.mxu0 %v231
        %252 = vmatpush1.bf16.msra.mxu0 %v230
        %253 = vmatprep.subr.bf16.mxu0 %v247
        %254 = vmatpush1.bf16.msra.mxu0 %v244
        %255 = vmatprep.subr.bf16.mxu0 0
        %256 = vmatpush1.bf16.msra.mxu0 0
        %257 = vmatprep.subr.bf16.mxu0 0
        %258 = vmatpush1.bf16.msra.mxu0 0
        %259 = vmatprep.subr.bf16.mxu0 0
        %260 = vmatpush1.bf16.msra.mxu0 0
        %261 = vmatprep.subr.bf16.mxu0 0
        %262 = vmatpush1.bf16.msra.mxu0 0
        %263 = vmatprep.subr.bf16.mxu0 0
        %264 = vmatpush1.bf16.msra.mxu0 0
        %265 = vmatprep.subr.bf16.mxu0 0
        %266 = vmatpush1.bf16.msra.mxu0 0
        %267 = vmatprep.subr.bf16.mxu0 0
        %268 = vmatpush1.bf16.msra.mxu0 0
        %269 = vmatprep.subr.bf16.mxu0 0
        %270 = vmatpush1.bf16.msra.mxu0 0
        %271 = vmatprep.subr.bf16.mxu0 0
        %272 = vmatpush1.bf16.msra.mxu0 0
        %273 = vmatprep.subr.bf16.mxu0 0
        %274 = vmatpush1.bf16.msra.mxu0 0
        %275 = vmatprep.subr.bf16.mxu0 0
        %276 = vmatpush1.bf16.msra.mxu0 0
        %277 = vmatprep.subr.bf16.mxu0 0
        %278 = vmatpush1.bf16.msra.mxu0 0
        %279 = vmatprep.subr.bf16.mxu0 0
        %280 = vmatpush1.bf16.msra.mxu0 0
        %281 = vmatprep.mubr.bf16.mxu0 0
        %282 = vmatmul.mubr.bf16.gmra.mrb[0].mxu0 %v240
        %v283 = vpop.f32.mrb[0].mxu0
        %v284 = vadd.f32 %v211, %v283
        %v285 = vpop.f32.mrb[0].mxu0
        %v286 = vadd.f32 %v211, %v285
        %v287 = vpop.f32.mrb[0].mxu0
        %v288 = vpop.f32.mrb[0].mxu0
        %289 = vdwg.mxu0
        %v290 = vmax.f32 %v284, 0.0
        %v291 = vmax.f32 %v286, 0.0
        %292 = vst [vmem:[%s188] sm:$0xff] %v290
        %293 = vst [vmem:[%s188 + $0x8] sm:$0xff] %v291
        %s294 = sand.u32 %s109, 1
        %s295 = scalar_lea.sflag [#allocation3], %s294
        %s296 = sand.u32 %s109, 1
        %s297 = smul.addr %s296, 16
        %s298 = scalar_lea.vmem [#allocation2], %s297
        // Predicated region
        $region33: #{tpu_custom_call.1} parent=31 // pred_check
          %p299 = pneg %p119
        $region34: #{tpu_custom_call.1} parent=31 // pred_check_branch
          %301 = sbr.rel (%p299) target = $region36
        $region35: #{tpu_custom_call.1} parent=31 // pred_region
          %s302 = smul.u32 2, %s22
          %s304 = ssub.s32 256, 256
          %305 = vsyncadd %s295, %s304
          %s306 = smul.addr %s21, 2
          %s307 = sadd.s32 %s302, %s306
          %s308 = smul.addr %s307, 128
          %s309 = scalar_lea.hbm %s3, %s308
          %s311 = sshll.u32 %s298, 4
          %s312 = int_to_ptr.vmem [resolvable:$true] %s311
          %314 = dma.vmem_to_hbm [thread:$0]  %s312, 256, %s309, %s295
        $region36: #{tpu_custom_call.1} parent=31 // pred_fallthru
          _
      $region32: #{tpu_custom_call.1} parent=5 // pred_fallthru
        _
      %p315 = scmp.le.s32.totalorder 2, %s12
      // Predicated region
      $region37: #{tpu_custom_call.1} parent=5 // pred_check
        %p316 = pneg %p315
      $region38: #{tpu_custom_call.1} parent=5 // pred_check_branch
        %318 = sbr.rel (%p316) target = $region40
      $region39: #{tpu_custom_call.1} parent=5 // pred_region
        %s319 = ssub.s32 %s12, 2
        // Predicated region
        $region41: #{tpu_custom_call.1} parent=39 // pred_check
          %p320 = pneg %p125
        $region42: #{tpu_custom_call.1} parent=39 // pred_check_branch
          %322 = sbr.rel (%p320) target = $region44
        $region43: #{tpu_custom_call.1} parent=39 // pred_region
          %s323 = sand.u32 %s110, 1
          %s324 = scalar_lea.sflag [#allocation3], %s323
          %s325 = sand.u32 %s110, 1
          %s326 = smul.addr %s325, 16
          %s327 = scalar_lea.vmem [#allocation2], %s326
          %328 = dma.done %s324, 256
        $region44: #{tpu_custom_call.1} parent=39 // pred_fallthru
          _
      $region40: #{tpu_custom_call.1} parent=5 // pred_fallthru
        _
    $region6: #{tpu_custom_call.1} parent=1 // loop_footer
      %s16 = sadd.s32 1, %s12
    $region7: #{tpu_custom_call.1} parent=1 // loop_footer_branch
      %11 = sbr.rel target = $region3
    $region8: #{tpu_custom_call.1} parent=1 // loop_exit
      _
    %329 = vsyncpa [#allocation3], 1
    %s330 = scalar_lea.sflag [#allocation3], 1
    %331 = vsyncpa %s330, 1

</llo_original>
